<compile_context>
chip_gen: v7x
topology: tpu7x:2x2x1
jax: 0.10.0
libtpu: 0.0.40
codegen_flags: <defaults>
</compile_context>

<pallas_src>
import functools
import math

import jax
import jax.numpy as jnp
from jax.experimental import pallas as pl
from jax.experimental.pallas import tpu as pltpu


def _round_up(x, m):
    return ((x + m - 1) // m) * m


def _coral_kernel(src_ref, tgt_ref, out_ref, s_sum, t_sum, acc, *,
                  ns, nt, d, tn_s, tn_t, ts, tt, is_sqrt, mm_dtype):
    i = pl.program_id(0)
    n_tiles = max(ts, tt)

    @pl.when(i == 0)
    def _init():
        s_sum[...] = jnp.zeros_like(s_sum)
        t_sum[...] = jnp.zeros_like(t_sum)
        acc[...] = jnp.zeros_like(acc)

    # Contract over the row axis directly (transposed-LHS MXU feed, no explicit .T).
    dn = (((0,), (0,)), ((), ()))
    s_scale = 1.0 / math.sqrt(ns - 1)
    t_scale = 1.0 / math.sqrt(nt - 1)

    def _accum(ref, sum_ref, tn, n_rows, scale, positive):
        row = i * tn + jax.lax.broadcasted_iota(jnp.int32, (tn, 1), 0)
        x = ref[...].astype(jnp.float32) * jnp.float32(scale)
        x = jnp.where(row < n_rows, x, 0.0).astype(mm_dtype)
        sum_ref[...] += jnp.sum(x.astype(jnp.float32), axis=0, keepdims=True)
        g = jax.lax.dot_general(x, x, dn, preferred_element_type=jnp.float32)
        if positive:
            acc[...] += g
        else:
            acc[...] -= g

    def _source():
        _accum(src_ref, s_sum, tn_s, ns, s_scale, True)

    def _target():
        _accum(tgt_ref, t_sum, tn_t, nt, t_scale, False)

    # Skip wasted matmuls on clamped (repeated) tiles when ns != nt.
    if ts == n_tiles:
        _source()
    else:
        pl.when(i < ts)(_source)
    if tt == n_tiles:
        _target()
    else:
        pl.when(i < tt)(_target)

    @pl.when(i == n_tiles - 1)
    def _finalize():
        def rank1(v):
            # (1, d) f32 -> outer(v, v): pad to 8 rows so the MXU sees the same
            # contract-over-rows pattern as the tile matmuls.
            vb = jnp.broadcast_to(v, (8, d))
            rows = jax.lax.broadcasted_iota(jnp.int32, (8, 1), 0)
            vz = jnp.where(rows == 0, vb, 0.0)
            return jax.lax.dot_general(vz, vz, dn, preferred_element_type=jnp.float32)

        diff = acc[...] - rank1(s_sum[...]) * jnp.float32(1.0 / ns)
        diff = diff + rank1(t_sum[...]) * jnp.float32(1.0 / nt)
        loss = jnp.sum(diff * diff, axis=1, keepdims=True)   # (d, 1)
        loss = jnp.sum(loss, axis=0, keepdims=True)          # (1, 1)
        if is_sqrt:  # static Python flag (module __init__ arg)
            loss = jnp.sqrt(loss)
        loss = loss / jnp.float32(4.0 * d * d)
        out_ref[0, 0] = loss[0, 0]


def _vmem_capacity_bytes():
    # Generation-aware VMEM capacity (v5e/v6e: 128 MiB, v7x: 64 MiB per core);
    # fall back to the smallest (v7x) figure if the query is unavailable.
    try:
        return int(pltpu.get_tpu_info().vmem_capacity_bytes)
    except Exception:
        return 64 * 1024 * 1024


def coral_loss(source, target, is_sqrt=False, tile_rows=None):
    """Pallas implementation of CoralLoss.forward(source, target)."""
    ns, d = source.shape
    nt, d_t = target.shape
    assert d == d_t, "source and target must share the feature dimension"
    assert ns > 1 and nt > 1, "need at least 2 instances per domain"

    itemsize = jnp.dtype(source.dtype).itemsize
    # bf16 inputs feed the MXU in bf16 (f32 accumulation); everything else runs f32.
    mm_dtype = jnp.bfloat16 if source.dtype == jnp.bfloat16 else jnp.float32
    sub = 16 if mm_dtype == jnp.bfloat16 else 8

    # --- generation-aware VMEM budget -> row-tile size --------------------------------
    cap = _vmem_capacity_bytes()
    vmem_limit = min(cap * 3 // 4, 96 * 1024 * 1024)
    acc_bytes = 4 * d * d
    # acc + one live (d,d) matmul result + padded column-sum scratches + slack.
    fixed = 2 * acc_bytes + 2 * 4 * 8 * max(d, 128) + (2 << 20)
    # Per tile row: 2 operands x (double-buffered DMA tile + ~2 f32 temporaries).
    per_row = 2 * d * (2 * itemsize + 8)
    budget = max(vmem_limit - fixed, 0)

    if tile_rows is not None:
        desired = _round_up(int(tile_rows), sub)
    else:
        desired = min(budget // per_row, 2048)
        if desired >= 256:
            desired = (desired // 256) * 256      # MXU-friendly contraction granularity
        elif desired >= 128:
            desired = 128
        else:
            desired = max(sub, (desired // sub) * sub)
    desired = max(desired, sub)

    def _pick_rows(rows):
        if rows <= sub:
            return rows                           # single block == full row extent
        return max(sub, min(desired, (rows // sub) * sub))

    tn_s = _pick_rows(ns)
    tn_t = _pick_rows(nt)
    ts = -(-ns // tn_s)          # number of source row tiles
    tt = -(-nt // tn_t)          # number of target row tiles
    n_tiles = max(ts, tt)

    vmem_limit = int(max(vmem_limit, fixed + per_row * max(tn_s, tn_t)))
    # TODO(synk): strip-tile the (d, d) accumulator over column blocks for d >= ~2048
    #             (required to fit v7x's 64 MiB VMEM); very large d currently relies on
    #             the full accumulator fitting on-chip.
    # TODO(synk): dual-TensorCore v7x variant (per-core partial Gram accumulators).
    # TODO(synk): optional bf16x3 MXU feed for f32 inputs on v6e/v7x compute-bound sizes.

    kernel = functools.partial(
        _coral_kernel, ns=ns, nt=nt, d=d, tn_s=tn_s, tn_t=tn_t, ts=ts, tt=tt,
        is_sqrt=bool(is_sqrt), mm_dtype=mm_dtype)

    grid_spec = pltpu.PrefetchScalarGridSpec(
        num_scalar_prefetch=0,
        grid=(n_tiles,),
        in_specs=[
            pl.BlockSpec((tn_s, d), lambda i: (jnp.minimum(i, ts - 1), 0)),
            pl.BlockSpec((tn_t, d), lambda i: (jnp.minimum(i, tt - 1), 0)),
        ],
        out_specs=pl.BlockSpec((1, 1), lambda i: (0, 0), memory_space=pltpu.SMEM),
        scratch_shapes=[
            pltpu.VMEM((1, d), jnp.float32),     # scaled source column sums
            pltpu.VMEM((1, d), jnp.float32),     # scaled target column sums
            pltpu.VMEM((d, d), jnp.float32),     # scaled Gram-difference accumulator
        ],
    )

    cost = pl.CostEstimate(
        flops=2 * (ns + nt) * d * d + 4 * 8 * d * d,
        transcendentals=0,
        bytes_accessed=(ns + nt) * d * itemsize + 4,
    )

    out = pl.pallas_call(
        kernel,
        out_shape=jax.ShapeDtypeStruct((1, 1), jnp.float32),
        grid_spec=grid_spec,
        compiler_params=pltpu.CompilerParams(
            dimension_semantics=("arbitrary",),
            vmem_limit_bytes=vmem_limit,
        ),
        cost_estimate=cost,
    )(source, target)
    return out[0, 0]


def _coral_loss_ref(source, target, is_sqrt=False):
    """Pure-JAX reference mirroring the PyTorch module (f32-accurate matmuls)."""
    source = source.astype(jnp.float32)
    target = target.astype(jnp.float32)
    ns, d = source.shape
    nt, _ = target.shape
    prec = jax.lax.Precision.HIGHEST
    xm = jnp.mean(source, axis=0, keepdims=True) - source
    xc = jnp.matmul(xm.T, xm, precision=prec) / (ns - 1)
    xmt = jnp.mean(target, axis=0, keepdims=True) - target
    xct = jnp.matmul(xmt.T, xmt, precision=prec) / (nt - 1)
    loss = jnp.sum((xc - xct) * (xc - xct))
    loss = (jnp.sqrt(loss) if is_sqrt else loss) / (4 * d * d)
    return loss


if __name__ == "__main__":
    key = jax.random.PRNGKey(0)
    k_src, k_tgt = jax.random.split(key)

    # --- small single-tile case (instances, features) ---
    ns, nt, d = 16, 8, 32
    source = jax.random.normal(k_src, (ns, d), dtype=jnp.float32)
    target = jax.random.normal(k_tgt, (nt, d), dtype=jnp.float32) * 1.5 + 0.3
    for is_sqrt in (False, True):
        got = jax.block_until_ready(coral_loss(source, target, is_sqrt=is_sqrt))
        want = jax.block_until_ready(_coral_loss_ref(source, target, is_sqrt=is_sqrt))
        assert jnp.allclose(got, want, rtol=1e-3, atol=1e-6), (got, want, is_sqrt)

    # --- multi-tile case: ragged-row masking, different tile counts (i < tt guard)
    #     and the clamped target index map ---
    ns2, nt2, d2 = 160, 96, 128
    src2 = jax.random.normal(jax.random.PRNGKey(1), (ns2, d2), dtype=jnp.float32)
    tgt2 = jax.random.normal(jax.random.PRNGKey(2), (nt2, d2), dtype=jnp.float32) * 0.7 - 0.2
    want2 = jax.block_until_ready(_coral_loss_ref(src2, tgt2, is_sqrt=False))
    got2 = jax.block_until_ready(coral_loss(src2, tgt2, is_sqrt=False, tile_rows=64))
    assert jnp.allclose(got2, want2, rtol=1e-3, atol=1e-5), (got2, want2)

    # --- automatic (budget-derived) tile sizing path on the same shapes ---
    got2b = jax.block_until_ready(coral_loss(src2, tgt2, is_sqrt=False))
    assert jnp.allclose(got2b, want2, rtol=1e-3, atol=1e-5), (got2b, want2)

    # --- bf16 inputs: f32 accumulation, MXU fed in bf16 (loose tolerance) ---
    src3 = src2.astype(jnp.bfloat16)
    tgt3 = tgt2.astype(jnp.bfloat16)
    got3 = jax.block_until_ready(coral_loss(src3, tgt3, is_sqrt=False, tile_rows=64))
    want3 = jax.block_until_ready(_coral_loss_ref(src3, tgt3, is_sqrt=False))
    assert jnp.allclose(got3, want3, rtol=5e-2, atol=1e-3), (got3, want3)

    print("KERNEL_OK")
</pallas_src>

<mosaic_0001>
module attributes {stable_mosaic.version = 11 : i64} {
  func.func @_coral_kernel(%arg0: i32, %arg1: memref<16x32xf32, #tpu.memory_space<vmem>>, %arg2: memref<8x32xf32, #tpu.memory_space<vmem>>, %arg3: memref<1x1xf32, #tpu.memory_space<smem>>, %arg4: memref<1x32xf32, #tpu.memory_space<vmem>>, %arg5: memref<1x32xf32, #tpu.memory_space<vmem>>, %arg6: memref<32x32xf32, #tpu.memory_space<vmem>>) attributes {dimension_semantics = [#tpu.dimension_semantics<arbitrary>], iteration_bounds = array<i64: 1>, scalar_prefetch = 0 : i64, scratch_operands = 3 : i64, tpu.core_type = #tpu.core_type<tc>, window_params = [{transform_indices = @transform_0, window_bounds = array<i64: 16, 32>}, {transform_indices = @transform_1, window_bounds = array<i64: 8, 32>}, {transform_indices = @transform_2, window_bounds = array<i64: 1, 1>}]} {
    %c0_i32 = arith.constant 0 : i32
    %0 = arith.cmpi eq, %arg0, %c0_i32 : i32
    %1 = arith.extui %0 : i1 to i32
    %c0_i32_0 = arith.constant 0 : i32
    %2 = arith.cmpi ne, %1, %c0_i32_0 : i32
    scf.if %2 {
      %cst_31 = arith.constant 0.000000e+00 : f32
      %50 = vector.broadcast %cst_31 : f32 to vector<1x32xf32>
      %c0_32 = arith.constant 0 : index
      %c0_33 = arith.constant 0 : index
      %51 = vector.load %arg4[%c0_32, %c0_33] : memref<1x32xf32, #tpu.memory_space<vmem>>, vector<1x32xf32>
      tpu.vector_store %arg4[%c0_32, %c0_33], %50 {strides = array<i32>} : memref<1x32xf32, #tpu.memory_space<vmem>>, vector<1x32xf32>,
      %cst_34 = arith.constant 0.000000e+00 : f32
      %52 = vector.broadcast %cst_34 : f32 to vector<1x32xf32>
      %c0_35 = arith.constant 0 : index
      %c0_36 = arith.constant 0 : index
      %53 = vector.load %arg5[%c0_35, %c0_36] : memref<1x32xf32, #tpu.memory_space<vmem>>, vector<1x32xf32>
      tpu.vector_store %arg5[%c0_35, %c0_36], %52 {strides = array<i32>} : memref<1x32xf32, #tpu.memory_space<vmem>>, vector<1x32xf32>,
      %cst_37 = arith.constant 0.000000e+00 : f32
      %54 = vector.broadcast %cst_37 : f32 to vector<32x32xf32>
      %c0_38 = arith.constant 0 : index
      %c0_39 = arith.constant 0 : index
      %55 = vector.load %arg6[%c0_38, %c0_39] : memref<32x32xf32, #tpu.memory_space<vmem>>, vector<32x32xf32>
      tpu.vector_store %arg6[%c0_38, %c0_39], %54 {strides = array<i32>} : memref<32x32xf32, #tpu.memory_space<vmem>>, vector<32x32xf32>,
    } else {
    }
    %c16_i32 = arith.constant 16 : i32
    %3 = arith.muli %arg0, %c16_i32 : i32
    %4 = tpu.iota {dimensions = array<i32: 0>} : vector<16x1xi32>
    %5 = vector.broadcast %3 : i32 to vector<16x1xi32>
    %6 = arith.addi %5, %4 : vector<16x1xi32>
    %c0 = arith.constant 0 : index
    %c0_1 = arith.constant 0 : index
    %7 = vector.load %arg1[%c0, %c0_1] : memref<16x32xf32, #tpu.memory_space<vmem>>, vector<16x32xf32>
    %cst = arith.constant 0.258198887 : f32
    %8 = vector.broadcast %cst : f32 to vector<16x32xf32>
    %9 = arith.mulf %7, %8 : vector<16x32xf32>
    %c16_i32_2 = arith.constant 16 : i32
    %10 = vector.broadcast %c16_i32_2 : i32 to vector<16x1xi32>
    %11 = arith.cmpi slt, %6, %10 : vector<16x1xi32>
    %cst_3 = arith.constant 0.000000e+00 : f32
    %12 = vector.shape_cast %11 : vector<16x1xi1> to vector<16x1xi1>
    %13 = vector.broadcast %12 : vector<16x1xi1> to vector<16x32xi1>
    %14 = vector.broadcast %cst_3 : f32 to vector<16x32xf32>
    %15 = arith.select %13, %9, %14 : vector<16x32xi1>, vector<16x32xf32>
    %c0_4 = arith.constant 0 : index
    %c0_5 = arith.constant 0 : index
    %16 = vector.load %arg4[%c0_4, %c0_5] : memref<1x32xf32, #tpu.memory_space<vmem>>, vector<1x32xf32>
    %cst_6 = arith.constant dense<0.000000e+00> : vector<32xf32>
    %17 = vector.multi_reduction <add>, %15, %cst_6 [0] : vector<16x32xf32> to vector<32xf32>
    %18 = vector.shape_cast %17 : vector<32xf32> to vector<1x32xf32>
    %19 = arith.addf %16, %18 : vector<1x32xf32>
    %c0_7 = arith.constant 0 : index
    %c0_8 = arith.constant 0 : index
    %20 = vector.load %arg4[%c0_7, %c0_8] : memref<1x32xf32, #tpu.memory_space<vmem>>, vector<1x32xf32>
    tpu.vector_store %arg4[%c0_7, %c0_8], %19 {strides = array<i32>} : memref<1x32xf32, #tpu.memory_space<vmem>>, vector<1x32xf32>,
    %cst_9 = arith.constant dense<0.000000e+00> : vector<32x32xf32>
    %21 = tpu.matmul %15, %15, %cst_9 {dimension_numbers = #tpu.dot_dimension_numbers<[0], [0], [1], [1], [0, 1, 1, 1], [], []>} : vector<16x32xf32>, vector<16x32xf32>, vector<32x32xf32> -> vector<32x32xf32>
    %c0_10 = arith.constant 0 : index
    %c0_11 = arith.constant 0 : index
    %22 = vector.load %arg6[%c0_10, %c0_11] : memref<32x32xf32, #tpu.memory_space<vmem>>, vector<32x32xf32>
    %23 = arith.addf %22, %21 : vector<32x32xf32>
    %c0_12 = arith.constant 0 : index
    %c0_13 = arith.constant 0 : index
    %24 = vector.load %arg6[%c0_12, %c0_13] : memref<32x32xf32, #tpu.memory_space<vmem>>, vector<32x32xf32>
    tpu.vector_store %arg6[%c0_12, %c0_13], %23 {strides = array<i32>} : memref<32x32xf32, #tpu.memory_space<vmem>>, vector<32x32xf32>,
    %c8_i32 = arith.constant 8 : i32
    %25 = arith.muli %arg0, %c8_i32 : i32
    %26 = tpu.iota {dimensions = array<i32: 0>} : vector<8x1xi32>
    %27 = vector.broadcast %25 : i32 to vector<8x1xi32>
    %28 = arith.addi %27, %26 : vector<8x1xi32>
    %c0_14 = arith.constant 0 : index
    %c0_15 = arith.constant 0 : index
    %29 = vector.load %arg2[%c0_14, %c0_15] : memref<8x32xf32, #tpu.memory_space<vmem>>, vector<8x32xf32>
    %cst_16 = arith.constant 0.377964467 : f32
    %30 = vector.broadcast %cst_16 : f32 to vector<8x32xf32>
    %31 = arith.mulf %29, %30 : vector<8x32xf32>
    %c8_i32_17 = arith.constant 8 : i32
    %32 = vector.broadcast %c8_i32_17 : i32 to vector<8x1xi32>
    %33 = arith.cmpi slt, %28, %32 : vector<8x1xi32>
    %cst_18 = arith.constant 0.000000e+00 : f32
    %34 = vector.shape_cast %33 : vector<8x1xi1> to vector<8x1xi1>
    %35 = vector.broadcast %34 : vector<8x1xi1> to vector<8x32xi1>
    %36 = vector.broadcast %cst_18 : f32 to vector<8x32xf32>
    %37 = arith.select %35, %31, %36 : vector<8x32xi1>, vector<8x32xf32>
    %c0_19 = arith.constant 0 : index
    %c0_20 = arith.constant 0 : index
    %38 = vector.load %arg5[%c0_19, %c0_20] : memref<1x32xf32, #tpu.memory_space<vmem>>, vector<1x32xf32>
    %cst_21 = arith.constant dense<0.000000e+00> : vector<32xf32>
    %39 = vector.multi_reduction <add>, %37, %cst_21 [0] : vector<8x32xf32> to vector<32xf32>
    %40 = vector.shape_cast %39 : vector<32xf32> to vector<1x32xf32>
    %41 = arith.addf %38, %40 : vector<1x32xf32>
    %c0_22 = arith.constant 0 : index
    %c0_23 = arith.constant 0 : index
    %42 = vector.load %arg5[%c0_22, %c0_23] : memref<1x32xf32, #tpu.memory_space<vmem>>, vector<1x32xf32>
    tpu.vector_store %arg5[%c0_22, %c0_23], %41 {strides = array<i32>} : memref<1x32xf32, #tpu.memory_space<vmem>>, vector<1x32xf32>,
    %cst_24 = arith.constant dense<0.000000e+00> : vector<32x32xf32>
    %43 = tpu.matmul %37, %37, %cst_24 {dimension_numbers = #tpu.dot_dimension_numbers<[0], [0], [1], [1], [0, 1, 1, 1], [], []>} : vector<8x32xf32>, vector<8x32xf32>, vector<32x32xf32> -> vector<32x32xf32>
    %c0_25 = arith.constant 0 : index
    %c0_26 = arith.constant 0 : index
    %44 = vector.load %arg6[%c0_25, %c0_26] : memref<32x32xf32, #tpu.memory_space<vmem>>, vector<32x32xf32>
    %45 = arith.subf %44, %43 : vector<32x32xf32>
    %c0_27 = arith.constant 0 : index
    %c0_28 = arith.constant 0 : index
    %46 = vector.load %arg6[%c0_27, %c0_28] : memref<32x32xf32, #tpu.memory_space<vmem>>, vector<32x32xf32>
    tpu.vector_store %arg6[%c0_27, %c0_28], %45 {strides = array<i32>} : memref<32x32xf32, #tpu.memory_space<vmem>>, vector<32x32xf32>,
    %c0_i32_29 = arith.constant 0 : i32
    %47 = arith.cmpi eq, %arg0, %c0_i32_29 : i32
    %48 = arith.extui %47 : i1 to i32
    %c0_i32_30 = arith.constant 0 : i32
    %49 = arith.cmpi ne, %48, %c0_i32_30 : i32
    scf.if %49 {
      %c0_31 = arith.constant 0 : index
      %c0_32 = arith.constant 0 : index
      %50 = vector.load %arg6[%c0_31, %c0_32] : memref<32x32xf32, #tpu.memory_space<vmem>>, vector<32x32xf32>
      %c0_33 = arith.constant 0 : index
      %c0_34 = arith.constant 0 : index
      %51 = vector.load %arg4[%c0_33, %c0_34] : memref<1x32xf32, #tpu.memory_space<vmem>>, vector<1x32xf32>
      %52 = vector.shape_cast %51 : vector<1x32xf32> to vector<1x32xf32>
      %53 = vector.broadcast %52 : vector<1x32xf32> to vector<8x32xf32>
      %54 = tpu.iota {dimensions = array<i32: 0>} : vector<8x1xi32>
      %c0_i32_35 = arith.constant 0 : i32
      %55 = vector.broadcast %c0_i32_35 : i32 to vector<8x1xi32>
      %56 = arith.cmpi eq, %54, %55 : vector<8x1xi32>
      %cst_36 = arith.constant 0.000000e+00 : f32
      %57 = vector.shape_cast %56 : vector<8x1xi1> to vector<8x1xi1>
      %58 = vector.broadcast %57 : vector<8x1xi1> to vector<8x32xi1>
      %59 = vector.broadcast %cst_36 : f32 to vector<8x32xf32>
      %60 = arith.select %58, %53, %59 : vector<8x32xi1>, vector<8x32xf32>
      %cst_37 = arith.constant dense<0.000000e+00> : vector<32x32xf32>
      %61 = tpu.matmul %60, %60, %cst_37 {dimension_numbers = #tpu.dot_dimension_numbers<[0], [0], [1], [1], [0, 1, 1, 1], [], []>} : vector<8x32xf32>, vector<8x32xf32>, vector<32x32xf32> -> vector<32x32xf32>
      %cst_38 = arith.constant 6.250000e-02 : f32
      %62 = vector.broadcast %cst_38 : f32 to vector<32x32xf32>
      %63 = arith.mulf %61, %62 : vector<32x32xf32>
      %64 = arith.subf %50, %63 : vector<32x32xf32>
      %c0_39 = arith.constant 0 : index
      %c0_40 = arith.constant 0 : index
      %65 = vector.load %arg5[%c0_39, %c0_40] : memref<1x32xf32, #tpu.memory_space<vmem>>, vector<1x32xf32>
      %66 = vector.shape_cast %65 : vector<1x32xf32> to vector<1x32xf32>
      %67 = vector.broadcast %66 : vector<1x32xf32> to vector<8x32xf32>
      %68 = tpu.iota {dimensions = array<i32: 0>} : vector<8x1xi32>
      %c0_i32_41 = arith.constant 0 : i32
      %69 = vector.broadcast %c0_i32_41 : i32 to vector<8x1xi32>
      %70 = arith.cmpi eq, %68, %69 : vector<8x1xi32>
      %cst_42 = arith.constant 0.000000e+00 : f32
      %71 = vector.shape_cast %70 : vector<8x1xi1> to vector<8x1xi1>
      %72 = vector.broadcast %71 : vector<8x1xi1> to vector<8x32xi1>
      %73 = vector.broadcast %cst_42 : f32 to vector<8x32xf32>
      %74 = arith.select %72, %67, %73 : vector<8x32xi1>, vector<8x32xf32>
      %cst_43 = arith.constant dense<0.000000e+00> : vector<32x32xf32>
      %75 = tpu.matmul %74, %74, %cst_43 {dimension_numbers = #tpu.dot_dimension_numbers<[0], [0], [1], [1], [0, 1, 1, 1], [], []>} : vector<8x32xf32>, vector<8x32xf32>, vector<32x32xf32> -> vector<32x32xf32>
      %cst_44 = arith.constant 1.250000e-01 : f32
      %76 = vector.broadcast %cst_44 : f32 to vector<32x32xf32>
      %77 = arith.mulf %75, %76 : vector<32x32xf32>
      %78 = arith.addf %64, %77 : vector<32x32xf32>
      %79 = arith.mulf %78, %78 : vector<32x32xf32>
      %cst_45 = arith.constant dense<0.000000e+00> : vector<32xf32>
      %80 = vector.multi_reduction <add>, %79, %cst_45 [1] : vector<32x32xf32> to vector<32xf32>
      %81 = vector.shape_cast %80 : vector<32xf32> to vector<32x1xf32>
      %cst_46 = arith.constant dense<0.000000e+00> : vector<1xf32>
      %82 = vector.multi_reduction <add>, %81, %cst_46 [0] : vector<32x1xf32> to vector<1xf32>
      %83 = vector.shape_cast %82 : vector<1xf32> to vector<1x1xf32>
      %cst_47 = arith.constant 4.096000e+03 : f32
      %84 = vector.broadcast %cst_47 : f32 to vector<1x1xf32>
      %85 = arith.divf %83, %84 : vector<1x1xf32>
      %86 = vector.extract %85[0, 0] : f32 from vector<1x1xf32>
      %c0_48 = arith.constant 0 : index
      %c0_49 = arith.constant 0 : index
      %87 = memref.load %arg3[%c0_48, %c0_49] : memref<1x1xf32, #tpu.memory_space<smem>>
      memref.store %86, %arg3[%c0_48, %c0_49] : memref<1x1xf32, #tpu.memory_space<smem>>
    } else {
    }
    return
  }
  func.func @transform_0(%arg0: i32) -> (i32, i32) {
    %c0_i32 = arith.constant 0 : i32
    %0 = arith.minsi %arg0, %c0_i32 : i32
    %c0_i32_0 = arith.constant 0 : i32
    %c0_i32_1 = arith.constant 0 : i32
    return %0, %c0_i32_0 : i32, i32
  }
  func.func @transform_1(%arg0: i32) -> (i32, i32) {
    %c0_i32 = arith.constant 0 : i32
    %0 = arith.minsi %arg0, %c0_i32 : i32
    %c0_i32_0 = arith.constant 0 : i32
    %c0_i32_1 = arith.constant 0 : i32
    return %0, %c0_i32_0 : i32, i32
  }
  func.func @transform_2(%arg0: i32) -> (i32, i32) {
    %c0_i32 = arith.constant 0 : i32
    %c0_i32_0 = arith.constant 0 : i32
    %c0_i32_1 = arith.constant 0 : i32
    return %c0_i32, %c0_i32_0 : i32, i32
  }
}

</mosaic_0001>

<llo_original>
// kernel: tpu_custom_call.1
$region0: #{tpu_custom_call.1}
  #allocation0 [shape = 'u32[]', space=smem, size = 0x4, offset = 0x4, fixed_abs, tag = 'smem constant byte address 0x4 - core index']
  #allocation1 [shape = 'u32[144,128]{1,0:T(1,128)}', space=vmem, size = 0x12000, scoped, tag = 'internal scratch']
  #allocation2 [shape = 'f32[1,32]{1,0:T(1,128)}', space=vmem, size = 0x200, scoped, tag = 'scratch operand']
  #allocation3 [shape = 'f32[1,32]{1,0:T(1,128)}', space=vmem, size = 0x200, scoped, tag = 'scratch operand']
  #allocation4 [shape = 'f32[32,32]{1,0:T(8,128)}', space=vmem, size = 0x4000, scoped, tag = 'scratch operand']
  %s0 = inlined_call_operand.hbm [shape: f32[16,32], index: 0, kind: input, shape index: {}]
  %s1 = inlined_call_operand.hbm [shape: f32[8,32], index: 1, kind: input, shape index: {}]
  %s2 = inlined_call_operand.hbm [shape: f32[1,1], index: 2, kind: output, shape index: {}]
  %s3 = sld [smem:[#allocation0]]
  $region34: #{tpu_custom_call.1} parent=0
    _
  %s5 = ssub.s32 1, %s3
  %s6 = scalar_select 0, %s5, %s3
  $region1: #{tpu_custom_call.1} parent=0
    #allocation5 [shape = 'u8[8192]{0}', space=vmem, size = 0x2000, scoped, tag = 'input window, operand 0, single buffered']
    #allocation6 [shape = 's32[1]{0}', space=sflag, size = 0x4, scoped, tag = 'scoped memory for tpu_custom_call.1']
    #allocation7 [shape = 's32[1]{0}', space=sflag, size = 0x4, scoped, tag = 'scoped memory for tpu_custom_call.1']
    #allocation8 [shape = 'u8[4096]{0}', space=vmem, size = 0x1000, scoped, tag = 'input window, operand 1, single buffered']
    #allocation9 [shape = 's32[1]{0}', space=sflag, size = 0x4, scoped, tag = 'scoped memory for tpu_custom_call.1']
    #allocation10 [shape = 'u8[512]{0}', space=smem, size = 0x200, scoped, tag = 'output window, operand 0, single buffered']
    %7 = vsyncpa [#allocation6], 0
    %8 = vsyncpa [#allocation9], 0
    %9 = vsyncpa [#allocation7], 0
    // Predicated region
    $region2: #{tpu_custom_call.1} parent=1 // pred_check
      _
    $region3: #{tpu_custom_call.1} parent=1 // pred_check_branch
      %11 = sbr.rel (0) target = $region5
    $region4: #{tpu_custom_call.1} parent=1 // pred_region
      %s13 = ssub.s32 256, 256
      %14 = vsyncadd [#allocation6], %s13
      %s15 = sshll.u32 [#allocation5], 4
      %s16 = int_to_ptr.vmem [resolvable:$true] %s15
      %21 = dma.hbm_to_vmem [thread:$0]  %s0, 256, %s16, [#allocation6], 128, 128, 8
    $region5: #{tpu_custom_call.1} parent=1 // pred_fallthru
      _
    // Predicated region
    $region6: #{tpu_custom_call.1} parent=1 // pred_check
      _
    $region7: #{tpu_custom_call.1} parent=1 // pred_check_branch
      %23 = sbr.rel (0) target = $region9
    $region8: #{tpu_custom_call.1} parent=1 // pred_region
      %s25 = ssub.s32 128, 128
      %26 = vsyncadd [#allocation9], %s25
      %s28 = sshll.u32 [#allocation8], 4
      %s29 = int_to_ptr.vmem [resolvable:$true] %s28
      %31 = dma.hbm_to_vmem [thread:$0]  %s1, 128, %s29, [#allocation9]
    $region9: #{tpu_custom_call.1} parent=1 // pred_fallthru
      _
    // Predicated region
    $region10: #{tpu_custom_call.1} parent=1 // pred_check
      _
    $region11: #{tpu_custom_call.1} parent=1 // pred_check_branch
      %33 = sbr.rel (0) target = $region13
    $region12: #{tpu_custom_call.1} parent=1 // pred_region
      %34 = dma.done [#allocation6], 256
    $region13: #{tpu_custom_call.1} parent=1 // pred_fallthru
      _
    // Predicated region
    $region14: #{tpu_custom_call.1} parent=1 // pred_check
      _
    $region15: #{tpu_custom_call.1} parent=1 // pred_check_branch
      %36 = sbr.rel (0) target = $region17
    $region16: #{tpu_custom_call.1} parent=1 // pred_region
      %37 = dma.done [#allocation9], 128
    $region17: #{tpu_custom_call.1} parent=1 // pred_fallthru
      _
    %p38 = scmp.eq.s32.totalorder 0, 0
    // Predicated region
    $region18: #{tpu_custom_call.1} parent=1 // pred_check
      %p39 = pneg %p38
    $region19: #{tpu_custom_call.1} parent=1 // pred_check_branch
      %41 = sbr.rel (%p39) target = $region21
    $region20: #{tpu_custom_call.1} parent=1 // pred_region
      %vm42 = vcmask 253952
      %43 = vst.msk [vmem:[#allocation2] sm:$0x1] %vm42, 0.0
      %44 = vst.msk [vmem:[#allocation3] sm:$0x1] %vm42, 0.0
      %vm45 = vcmask 261120
      %46 = vst.msk [vmem:[#allocation4] sm:$0xff] %vm45, 0.0
      %47 = vst.msk [vmem:[#allocation4 + $0x8] sm:$0xff] %vm45, 0.0
      %48 = vst.msk [vmem:[#allocation4 + $0x10] sm:$0xff] %vm45, 0.0
      %49 = vst.msk [vmem:[#allocation4 + $0x18] sm:$0xff] %vm45, 0.0
    $region21: #{tpu_custom_call.1} parent=1 // pred_fallthru
      _
    %s50 = smul.u32 0, 16
    %v51 = vlaneseq
    %v52 = vshrl.u32 %v51, 7
    %v53 = vadd.s32 %v52, 8
    %v54 = vstv %s50
    %v55 = vadd.s32 %v54, %v52
    %v56 = vadd.s32 %v54, %v53
    %v57 = vld [vmem:[#allocation5] sm:$0xff]
    %v58 = vld [vmem:[#allocation5 + $0x8] sm:$0xff]
    %v59 = vmul.f32 %v57, 0.2581989
    %v60 = vmul.f32 %v58, 0.2581989
    %vm61 = vcmp.lt.s32.totalorder %v55, 16
    %vm62 = vcmp.lt.s32.totalorder %v56, 16
    %v63 = vsel %vm61, 1, 0
    %v64 = vsel %vm62, 1, 0
    %vm65 = vcmp.eq.s32.totalorder %v63, 1
    %vm66 = vcmp.eq.s32.totalorder %v64, 1
    %v67 = vsel %vm65, %v59, 0.0
    %v68 = vsel %vm66, %v60, 0.0
    %v69 = vld [vmem:[#allocation2] sm:$0x1]
    %vm70 = vcmask 261120
    %v71 = vsel %vm70, %v67, 0.0
    %v72 = vsel %vm70, %v68, 0.0
    %v73 = vadd.f32 %v71, %v72
    %v74 = vrot.slane %v73, 4
    %v75 = vadd.f32 %v73, %v74
    %v76 = vrot.slane %v75, 2
    %v77 = vadd.f32 %v75, %v76
    %v78 = vrot.slane %v77, 1
    %v79 = vadd.f32 %v77, %v78
    %v80 = vadd.f32 %v69, %v79
    %vm81 = vcmask 253952
    %82 = vst.msk [vmem:[#allocation2] sm:$0x1] %vm81, %v80
    %83 = vxpose.xlu0.b32.start [1/16] %v67, 128
    %84 = vxpose.xlu0.b32.cont [2/16] %v68, 128
    %85 = vxpose.xlu0.b32.cont [3/16] 0.0, 128
    %86 = vxpose.xlu0.b32.cont [4/16] 0.0, 128
    %87 = vxpose.xlu0.b32.cont [5/16] 0.0, 128
    %88 = vxpose.xlu0.b32.cont [6/16] 0.0, 128
    %89 = vxpose.xlu0.b32.cont [7/16] 0.0, 128
    %90 = vxpose.xlu0.b32.cont [8/16] 0.0, 128
    %91 = vxpose.xlu0.b32.cont [9/16] 0.0, 128
    %92 = vxpose.xlu0.b32.cont [10/16] 0.0, 128
    %93 = vxpose.xlu0.b32.cont [11/16] 0.0, 128
    %94 = vxpose.xlu0.b32.cont [12/16] 0.0, 128
    %95 = vxpose.xlu0.b32.cont [13/16] 0.0, 128
    %96 = vxpose.xlu0.b32.cont [14/16] 0.0, 128
    %97 = vxpose.xlu0.b32.cont [15/16] 0.0, 128
    %98 = vxpose.xlu0.b32.end [16/16] 0.0, 128
    %v99 = vpop.trf.xlu0
    %v100 = vpop.trf.xlu0
    %v101 = vpop.trf.xlu0
    %v102 = vpop.trf.xlu0
    %v103 = vpop.trf.xlu0
    %v104 = vpop.trf.xlu0
    %v105 = vpop.trf.xlu0
    %v106 = vpop.trf.xlu0
    %v107 = vpop.trf.xlu0
    %v108 = vpop.trf.xlu0
    %v109 = vpop.trf.xlu0
    %v110 = vpop.trf.xlu0
    %v111 = vpop.trf.xlu0
    %v112 = vpop.trf.xlu0
    %v113 = vpop.trf.xlu0
    %v114 = vpop.trf.xlu0
    %vm115 = vcmask 130048
    %v117 = vsel %vm115, %v99, 0
    %v120 = vsel %vm115, %v100, 0
    %v123 = vsel %vm115, %v101, 0
    %v126 = vsel %vm115, %v102, 0
    %128 = vmatprep.subr.mxu0 0.0
    %129 = vmatpush1.msra.mxu0 %v67
    %130 = vmatprep.subr.mxu0 0.0
    %131 = vmatpush1.msra.mxu0 %v68
    %132 = vmatprep.subr.mxu0 0.0
    %133 = vmatpush1.msra.mxu0 0.0
    %134 = vmatprep.subr.mxu0 0.0
    %135 = vmatpush1.msra.mxu0 0.0
    %136 = vmatprep.subr.mxu0 0.0
    %137 = vmatpush1.msra.mxu0 0.0
    %138 = vmatprep.subr.mxu0 0.0
    %139 = vmatpush1.msra.mxu0 0.0
    %140 = vmatprep.subr.mxu0 0.0
    %141 = vmatpush1.msra.mxu0 0.0
    %142 = vmatprep.subr.mxu0 0.0
    %143 = vmatpush1.msra.mxu0 0.0
    %144 = vmatprep.subr.mxu0 0.0
    %145 = vmatpush1.msra.mxu0 0.0
    %146 = vmatprep.subr.mxu0 0.0
    %147 = vmatpush1.msra.mxu0 0.0
    %148 = vmatprep.subr.mxu0 0.0
    %149 = vmatpush1.msra.mxu0 0.0
    %150 = vmatprep.subr.mxu0 0.0
    %151 = vmatpush1.msra.mxu0 0.0
    %152 = vmatprep.subr.mxu0 0.0
    %153 = vmatpush1.msra.mxu0 0.0
    %154 = vmatprep.subr.mxu0 0.0
    %155 = vmatpush1.msra.mxu0 0.0
    %156 = vmatprep.subr.mxu0 0.0
    %157 = vmatpush1.msra.mxu0 0.0
    %158 = vmatprep.subr.mxu0 0.0
    %159 = vmatpush1.msra.mxu0 0.0
    %160 = vmatprep.subr.mxu0 0.0
    %161 = vmatpush1.msra.mxu0 0.0
    %162 = vmatprep.subr.mxu0 0.0
    %163 = vmatpush1.msra.mxu0 0.0
    %164 = vmatprep.subr.mxu0 0.0
    %165 = vmatpush1.msra.mxu0 0.0
    %166 = vmatprep.subr.mxu0 0.0
    %167 = vmatpush1.msra.mxu0 0.0
    %168 = vmatprep.subr.mxu0 0.0
    %169 = vmatpush1.msra.mxu0 0.0
    %170 = vmatprep.subr.mxu0 0.0
    %171 = vmatpush1.msra.mxu0 0.0
    %172 = vmatprep.subr.mxu0 0.0
    %173 = vmatpush1.msra.mxu0 0.0
    %174 = vmatprep.subr.mxu0 0.0
    %175 = vmatpush1.msra.mxu0 0.0
    %176 = vmatprep.subr.mxu0 0.0
    %177 = vmatpush1.msra.mxu0 0.0
    %178 = vmatprep.subr.mxu0 0.0
    %179 = vmatpush1.msra.mxu0 0.0
    %180 = vmatprep.subr.mxu0 0.0
    %181 = vmatpush1.msra.mxu0 0.0
    %182 = vmatprep.subr.mxu0 0.0
    %183 = vmatpush1.msra.mxu0 0.0
    %184 = vmatprep.subr.mxu0 0.0
    %185 = vmatpush1.msra.mxu0 0.0
    %186 = vmatprep.subr.mxu0 0.0
    %187 = vmatpush1.msra.mxu0 0.0
    %188 = vmatprep.subr.mxu0 0.0
    %189 = vmatpush1.msra.mxu0 0.0
    %190 = vmatprep.subr.mxu0 0.0
    %191 = vmatpush1.msra.mxu0 0.0
    %192 = vmatprep.mubr.f32.mxu0 0.0
    %193 = vmatmul.mubr.f32.gmra.mrb[0].mxu0 %v117
    %v194 = vpop.f32.mrb[0].mxu0
    %v195 = vadd.f32 0.0, %v194
    %v196 = vpop.f32.mrb[0].mxu0
    %197 = vmatprep.mubr.f32.mxu0 0.0
    %198 = vmatmul.mubr.f32.gmra.mrb[0].mxu0 %v120
    %v199 = vpop.f32.mrb[0].mxu0
    %v200 = vadd.f32 0.0, %v199
    %v201 = vpop.f32.mrb[0].mxu0
    %202 = vmatprep.mubr.f32.mxu0 0.0
    %203 = vmatmul.mubr.f32.gmra.mrb[0].mxu0 %v123
    %v204 = vpop.f32.mrb[0].mxu0
    %v205 = vadd.f32 0.0, %v204
    %v206 = vpop.f32.mrb[0].mxu0
    %207 = vmatprep.mubr.f32.mxu0 0.0
    %208 = vmatmul.mubr.f32.gmra.mrb[0].mxu0 %v126
    %v209 = vpop.f32.mrb[0].mxu0
    %v210 = vadd.f32 0.0, %v209
    %v211 = vpop.f32.mrb[0].mxu0
    %212 = vdwg.mxu0
    %v213 = vld [vmem:[#allocation4] sm:$0xff]
    %v214 = vld [vmem:[#allocation4 + $0x8] sm:$0xff]
    %v215 = vld [vmem:[#allocation4 + $0x10] sm:$0xff]
    %v216 = vld [vmem:[#allocation4 + $0x18] sm:$0xff]
    %v217 = vadd.f32 %v213, %v195
    %v218 = vadd.f32 %v214, %v200
    %v219 = vadd.f32 %v215, %v205
    %v220 = vadd.f32 %v216, %v210
    %221 = vst.msk [vmem:[#allocation4] sm:$0xff] %vm70, %v217
    %222 = vst.msk [vmem:[#allocation4 + $0x8] sm:$0xff] %vm70, %v218
    %223 = vst.msk [vmem:[#allocation4 + $0x10] sm:$0xff] %vm70, %v219
    %224 = vst.msk [vmem:[#allocation4 + $0x18] sm:$0xff] %vm70, %v220
    %s225 = smul.u32 0, 8
    %v226 = vstv %s225
    %v227 = vadd.s32 %v226, %v52
    %v228 = vld [vmem:[#allocation8] sm:$0xff]
    %v229 = vmul.f32 %v228, 0.37796447
    %vm230 = vcmp.lt.s32.totalorder %v227, 8
    %v231 = vsel %vm230, 1, 0
    %vm232 = vcmp.eq.s32.totalorder %v231, 1
    %v233 = vsel %vm232, %v229, 0.0
    %v234 = vld [vmem:[#allocation3] sm:$0x1]
    %v235 = vsel %vm70, %v233, 0.0
    %v236 = vrot.slane %v235, 4
    %v237 = vadd.f32 %v235, %v236
    %v238 = vrot.slane %v237, 2
    %v239 = vadd.f32 %v237, %v238
    %v240 = vrot.slane %v239, 1
    %v241 = vadd.f32 %v239, %v240
    %v242 = vadd.f32 %v234, %v241
    %243 = vst.msk [vmem:[#allocation3] sm:$0x1] %vm81, %v242
    %244 = vxpose.xlu0.b32.start [1/16] %v233, 128
    %245 = vxpose.xlu0.b32.cont [2/16] 0.0, 128
    %246 = vxpose.xlu0.b32.cont [3/16] 0.0, 128
    %247 = vxpose.xlu0.b32.cont [4/16] 0.0, 128
    %248 = vxpose.xlu0.b32.cont [5/16] 0.0, 128
    %249 = vxpose.xlu0.b32.cont [6/16] 0.0, 128
    %250 = vxpose.xlu0.b32.cont [7/16] 0.0, 128
    %251 = vxpose.xlu0.b32.cont [8/16] 0.0, 128
    %252 = vxpose.xlu0.b32.cont [9/16] 0.0, 128
    %253 = vxpose.xlu0.b32.cont [10/16] 0.0, 128
    %254 = vxpose.xlu0.b32.cont [11/16] 0.0, 128
    %255 = vxpose.xlu0.b32.cont [12/16] 0.0, 128
    %256 = vxpose.xlu0.b32.cont [13/16] 0.0, 128
    %257 = vxpose.xlu0.b32.cont [14/16] 0.0, 128
    %258 = vxpose.xlu0.b32.cont [15/16] 0.0, 128
    %259 = vxpose.xlu0.b32.end [16/16] 0.0, 128
    %v260 = vpop.trf.xlu0
    %v261 = vpop.trf.xlu0
    %v262 = vpop.trf.xlu0
    %v263 = vpop.trf.xlu0
    %v264 = vpop.trf.xlu0
    %v265 = vpop.trf.xlu0
    %v266 = vpop.trf.xlu0
    %v267 = vpop.trf.xlu0
    %v268 = vpop.trf.xlu0
    %v269 = vpop.trf.xlu0
    %v270 = vpop.trf.xlu0
    %v271 = vpop.trf.xlu0
    %v272 = vpop.trf.xlu0
    %v273 = vpop.trf.xlu0
    %v274 = vpop.trf.xlu0
    %v275 = vpop.trf.xlu0
    %vm276 = vcmask 64512
    %v278 = vsel %vm276, %v260, 0
    %v281 = vsel %vm276, %v261, 0
    %v284 = vsel %vm276, %v262, 0
    %v287 = vsel %vm276, %v263, 0
    %289 = vmatprep.subr.mxu0 0.0
    %290 = vmatpush1.msra.mxu0 %v233
    %291 = vmatprep.subr.mxu0 0.0
    %292 = vmatpush1.msra.mxu0 0.0
    %293 = vmatprep.subr.mxu0 0.0
    %294 = vmatpush1.msra.mxu0 0.0
    %295 = vmatprep.subr.mxu0 0.0
    %296 = vmatpush1.msra.mxu0 0.0
    %297 = vmatprep.subr.mxu0 0.0
    %298 = vmatpush1.msra.mxu0 0.0
    %299 = vmatprep.subr.mxu0 0.0
    %300 = vmatpush1.msra.mxu0 0.0
    %301 = vmatprep.subr.mxu0 0.0
    %302 = vmatpush1.msra.mxu0 0.0
    %303 = vmatprep.subr.mxu0 0.0
    %304 = vmatpush1.msra.mxu0 0.0
    %305 = vmatprep.subr.mxu0 0.0
    %306 = vmatpush1.msra.mxu0 0.0
    %307 = vmatprep.subr.mxu0 0.0
    %308 = vmatpush1.msra.mxu0 0.0
    %309 = vmatprep.subr.mxu0 0.0
    %310 = vmatpush1.msra.mxu0 0.0
    %311 = vmatprep.subr.mxu0 0.0
    %312 = vmatpush1.msra.mxu0 0.0
    %313 = vmatprep.subr.mxu0 0.0
    %314 = vmatpush1.msra.mxu0 0.0
    %315 = vmatprep.subr.mxu0 0.0
    %316 = vmatpush1.msra.mxu0 0.0
    %317 = vmatprep.subr.mxu0 0.0
    %318 = vmatpush1.msra.mxu0 0.0
    %319 = vmatprep.subr.mxu0 0.0
    %320 = vmatpush1.msra.mxu0 0.0
    %321 = vmatprep.subr.mxu0 0.0
    %322 = vmatpush1.msra.mxu0 0.0
    %323 = vmatprep.subr.mxu0 0.0
    %324 = vmatpush1.msra.mxu0 0.0
    %325 = vmatprep.subr.mxu0 0.0
    %326 = vmatpush1.msra.mxu0 0.0
    %327 = vmatprep.subr.mxu0 0.0
    %328 = vmatpush1.msra.mxu0 0.0
    %329 = vmatprep.subr.mxu0 0.0
    %330 = vmatpush1.msra.mxu0 0.0
    %331 = vmatprep.subr.mxu0 0.0
    %332 = vmatpush1.msra.mxu0 0.0
    %333 = vmatprep.subr.mxu0 0.0
    %334 = vmatpush1.msra.mxu0 0.0
    %335 = vmatprep.subr.mxu0 0.0
    %336 = vmatpush1.msra.mxu0 0.0
    %337 = vmatprep.subr.mxu0 0.0
    %338 = vmatpush1.msra.mxu0 0.0
    %339 = vmatprep.subr.mxu0 0.0
    %340 = vmatpush1.msra.mxu0 0.0
    %341 = vmatprep.subr.mxu0 0.0
    %342 = vmatpush1.msra.mxu0 0.0
    %343 = vmatprep.subr.mxu0 0.0
    %344 = vmatpush1.msra.mxu0 0.0
    %345 = vmatprep.subr.mxu0 0.0
    %346 = vmatpush1.msra.mxu0 0.0
    %347 = vmatprep.subr.mxu0 0.0
    %348 = vmatpush1.msra.mxu0 0.0
    %349 = vmatprep.subr.mxu0 0.0
    %350 = vmatpush1.msra.mxu0 0.0
    %351 = vmatprep.subr.mxu0 0.0
    %352 = vmatpush1.msra.mxu0 0.0
    %353 = vmatprep.mubr.f32.mxu0 0.0
    %354 = vmatmul.mubr.f32.gmra.mrb[0].mxu0 %v278
    %v355 = vpop.f32.mrb[0].mxu0
    %v356 = vadd.f32 0.0, %v355
    %v357 = vpop.f32.mrb[0].mxu0
    %358 = vmatprep.mubr.f32.mxu0 0.0
    %359 = vmatmul.mubr.f32.gmra.mrb[0].mxu0 %v281
    %v360 = vpop.f32.mrb[0].mxu0
    %v361 = vadd.f32 0.0, %v360
    %v362 = vpop.f32.mrb[0].mxu0
    %363 = vmatprep.mubr.f32.mxu0 0.0
    %364 = vmatmul.mubr.f32.gmra.mrb[0].mxu0 %v284
    %v365 = vpop.f32.mrb[0].mxu0
    %v366 = vadd.f32 0.0, %v365
    %v367 = vpop.f32.mrb[0].mxu0
    %368 = vmatprep.mubr.f32.mxu0 0.0
    %369 = vmatmul.mubr.f32.gmra.mrb[0].mxu0 %v287
    %v370 = vpop.f32.mrb[0].mxu0
    %v371 = vadd.f32 0.0, %v370
    %v372 = vpop.f32.mrb[0].mxu0
    %373 = vdwg.mxu0
    %v374 = vld [vmem:[#allocation4] sm:$0xff]
    %v375 = vld [vmem:[#allocation4 + $0x8] sm:$0xff]
    %v376 = vld [vmem:[#allocation4 + $0x10] sm:$0xff]
    %v377 = vld [vmem:[#allocation4 + $0x18] sm:$0xff]
    %v378 = vsub.f32 %v374, %v356
    %v379 = vsub.f32 %v375, %v361
    %v380 = vsub.f32 %v376, %v366
    %v381 = vsub.f32 %v377, %v371
    %382 = vst.msk [vmem:[#allocation4] sm:$0xff] %vm70, %v378
    %383 = vst.msk [vmem:[#allocation4 + $0x8] sm:$0xff] %vm70, %v379
    %384 = vst.msk [vmem:[#allocation4 + $0x10] sm:$0xff] %vm70, %v380
    %385 = vst.msk [vmem:[#allocation4 + $0x18] sm:$0xff] %vm70, %v381
    // Predicated region
    $region22: #{tpu_custom_call.1} parent=1 // pred_check
      %p386 = pneg %p38
    $region23: #{tpu_custom_call.1} parent=1 // pred_check_branch
      %388 = sbr.rel (%p386) target = $region25
    $region24: #{tpu_custom_call.1} parent=1 // pred_region
      %v389 = vld [vmem:[#allocation4] sm:$0xff]
      %v390 = vld [vmem:[#allocation4 + $0x8] sm:$0xff]
      %v391 = vld [vmem:[#allocation4 + $0x10] sm:$0xff]
      %v392 = vld [vmem:[#allocation4 + $0x18] sm:$0xff]
      %v393 = vld [vmem:[#allocation2] sm:$0x1]
      %v395 = vlaneseq
      %v396 = vshrl.u32 %v395, 7
      %v397 = vsub.s32 0, %v396
      %v398 = vrot.slane %v393, %v397
      %vm400 = vcmp.eq.s32.totalorder %v52, 0
      %v401 = vsel %vm400, 1, 0
      %vm402 = vcmp.eq.s32.totalorder %v401, 1
      %v403 = vsel %vm402, %v398, 0.0
      %404 = vxpose.xlu0.b32.start [1/16] %v403, 128
      %405 = vxpose.xlu0.b32.cont [2/16] 0.0, 128
      %406 = vxpose.xlu0.b32.cont [3/16] 0.0, 128
      %407 = vxpose.xlu0.b32.cont [4/16] 0.0, 128
      %408 = vxpose.xlu0.b32.cont [5/16] 0.0, 128
      %409 = vxpose.xlu0.b32.cont [6/16] 0.0, 128
      %410 = vxpose.xlu0.b32.cont [7/16] 0.0, 128
      %411 = vxpose.xlu0.b32.cont [8/16] 0.0, 128
      %412 = vxpose.xlu0.b32.cont [9/16] 0.0, 128
      %413 = vxpose.xlu0.b32.cont [10/16] 0.0, 128
      %414 = vxpose.xlu0.b32.cont [11/16] 0.0, 128
      %415 = vxpose.xlu0.b32.cont [12/16] 0.0, 128
      %416 = vxpose.xlu0.b32.cont [13/16] 0.0, 128
      %417 = vxpose.xlu0.b32.cont [14/16] 0.0, 128
      %418 = vxpose.xlu0.b32.cont [15/16] 0.0, 128
      %419 = vxpose.xlu0.b32.end [16/16] 0.0, 128
      %v420 = vpop.trf.xlu0
      %v421 = vpop.trf.xlu0
      %v422 = vpop.trf.xlu0
      %v423 = vpop.trf.xlu0
      %v424 = vpop.trf.xlu0
      %v425 = vpop.trf.xlu0
      %v426 = vpop.trf.xlu0
      %v427 = vpop.trf.xlu0
      %v428 = vpop.trf.xlu0
      %v429 = vpop.trf.xlu0
      %v430 = vpop.trf.xlu0
      %v431 = vpop.trf.xlu0
      %v432 = vpop.trf.xlu0
      %v433 = vpop.trf.xlu0
      %v434 = vpop.trf.xlu0
      %v435 = vpop.trf.xlu0
      %v437 = vsel %vm276, %v420, 0
      %v440 = vsel %vm276, %v421, 0
      %v443 = vsel %vm276, %v422, 0
      %v446 = vsel %vm276, %v423, 0
      %448 = vmatprep.subr.mxu0 0.0
      %449 = vmatpush1.msra.mxu0 %v403
      %450 = vmatprep.subr.mxu0 0.0
      %451 = vmatpush1.msra.mxu0 0.0
      %452 = vmatprep.subr.mxu0 0.0
      %453 = vmatpush1.msra.mxu0 0.0
      %454 = vmatprep.subr.mxu0 0.0
      %455 = vmatpush1.msra.mxu0 0.0
      %456 = vmatprep.subr.mxu0 0.0
      %457 = vmatpush1.msra.mxu0 0.0
      %458 = vmatprep.subr.mxu0 0.0
      %459 = vmatpush1.msra.mxu0 0.0
      %460 = vmatprep.subr.mxu0 0.0
      %461 = vmatpush1.msra.mxu0 0.0
      %462 = vmatprep.subr.mxu0 0.0
      %463 = vmatpush1.msra.mxu0 0.0
      %464 = vmatprep.subr.mxu0 0.0
      %465 = vmatpush1.msra.mxu0 0.0
      %466 = vmatprep.subr.mxu0 0.0
      %467 = vmatpush1.msra.mxu0 0.0
      %468 = vmatprep.subr.mxu0 0.0
      %469 = vmatpush1.msra.mxu0 0.0
      %470 = vmatprep.subr.mxu0 0.0
      %471 = vmatpush1.msra.mxu0 0.0
      %472 = vmatprep.subr.mxu0 0.0
      %473 = vmatpush1.msra.mxu0 0.0
      %474 = vmatprep.subr.mxu0 0.0
      %475 = vmatpush1.msra.mxu0 0.0
      %476 = vmatprep.subr.mxu0 0.0
      %477 = vmatpush1.msra.mxu0 0.0
      %478 = vmatprep.subr.mxu0 0.0
      %479 = vmatpush1.msra.mxu0 0.0
      %480 = vmatprep.subr.mxu0 0.0
      %481 = vmatpush1.msra.mxu0 0.0
      %482 = vmatprep.subr.mxu0 0.0
      %483 = vmatpush1.msra.mxu0 0.0
      %484 = vmatprep.subr.mxu0 0.0
      %485 = vmatpush1.msra.mxu0 0.0
      %486 = vmatprep.subr.mxu0 0.0
      %487 = vmatpush1.msra.mxu0 0.0
      %488 = vmatprep.subr.mxu0 0.0
      %489 = vmatpush1.msra.mxu0 0.0
      %490 = vmatprep.subr.mxu0 0.0
      %491 = vmatpush1.msra.mxu0 0.0
      %492 = vmatprep.subr.mxu0 0.0
      %493 = vmatpush1.msra.mxu0 0.0
      %494 = vmatprep.subr.mxu0 0.0
      %495 = vmatpush1.msra.mxu0 0.0
      %496 = vmatprep.subr.mxu0 0.0
      %497 = vmatpush1.msra.mxu0 0.0
      %498 = vmatprep.subr.mxu0 0.0
      %499 = vmatpush1.msra.mxu0 0.0
      %500 = vmatprep.subr.mxu0 0.0
      %501 = vmatpush1.msra.mxu0 0.0
      %502 = vmatprep.subr.mxu0 0.0
      %503 = vmatpush1.msra.mxu0 0.0
      %504 = vmatprep.subr.mxu0 0.0
      %505 = vmatpush1.msra.mxu0 0.0
      %506 = vmatprep.subr.mxu0 0.0
      %507 = vmatpush1.msra.mxu0 0.0
      %508 = vmatprep.subr.mxu0 0.0
      %509 = vmatpush1.msra.mxu0 0.0
      %510 = vmatprep.subr.mxu0 0.0
      %511 = vmatpush1.msra.mxu0 0.0
      %512 = vmatprep.mubr.f32.mxu0 0.0
      %513 = vmatmul.mubr.f32.gmra.mrb[0].mxu0 %v437
      %v514 = vpop.f32.mrb[0].mxu0
      %v515 = vadd.f32 0.0, %v514
      %v516 = vpop.f32.mrb[0].mxu0
      %517 = vmatprep.mubr.f32.mxu0 0.0
      %518 = vmatmul.mubr.f32.gmra.mrb[0].mxu0 %v440
      %v519 = vpop.f32.mrb[0].mxu0
      %v520 = vadd.f32 0.0, %v519
      %v521 = vpop.f32.mrb[0].mxu0
      %522 = vmatprep.mubr.f32.mxu0 0.0
      %523 = vmatmul.mubr.f32.gmra.mrb[0].mxu0 %v443
      %v524 = vpop.f32.mrb[0].mxu0
      %v525 = vadd.f32 0.0, %v524
      %v526 = vpop.f32.mrb[0].mxu0
      %527 = vmatprep.mubr.f32.mxu0 0.0
      %528 = vmatmul.mubr.f32.gmra.mrb[0].mxu0 %v446
      %v529 = vpop.f32.mrb[0].mxu0
      %v530 = vadd.f32 0.0, %v529
      %v531 = vpop.f32.mrb[0].mxu0
      %532 = vdwg.mxu0
      %v533 = vmul.f32 %v515, 0.0625
      %v534 = vmul.f32 %v520, 0.0625
      %v535 = vmul.f32 %v525, 0.0625
      %v536 = vmul.f32 %v530, 0.0625
      %v537 = vsub.f32 %v389, %v533
      %v538 = vsub.f32 %v390, %v534
      %v539 = vsub.f32 %v391, %v535
      %v540 = vsub.f32 %v392, %v536
      %v541 = vld [vmem:[#allocation3] sm:$0x1]
      %v543 = vlaneseq
      %v544 = vshrl.u32 %v543, 7
      %v545 = vsub.s32 0, %v544
      %v546 = vrot.slane %v541, %v545
      %v548 = vsel %vm402, %v546, 0.0
      %549 = vxpose.xlu0.b32.start [1/16] %v548, 128
      %550 = vxpose.xlu0.b32.cont [2/16] 0.0, 128
      %551 = vxpose.xlu0.b32.cont [3/16] 0.0, 128
      %552 = vxpose.xlu0.b32.cont [4/16] 0.0, 128
      %553 = vxpose.xlu0.b32.cont [5/16] 0.0, 128
      %554 = vxpose.xlu0.b32.cont [6/16] 0.0, 128
      %555 = vxpose.xlu0.b32.cont [7/16] 0.0, 128
      %556 = vxpose.xlu0.b32.cont [8/16] 0.0, 128
      %557 = vxpose.xlu0.b32.cont [9/16] 0.0, 128
      %558 = vxpose.xlu0.b32.cont [10/16] 0.0, 128
      %559 = vxpose.xlu0.b32.cont [11/16] 0.0, 128
      %560 = vxpose.xlu0.b32.cont [12/16] 0.0, 128
      %561 = vxpose.xlu0.b32.cont [13/16] 0.0, 128
      %562 = vxpose.xlu0.b32.cont [14/16] 0.0, 128
      %563 = vxpose.xlu0.b32.cont [15/16] 0.0, 128
      %564 = vxpose.xlu0.b32.end [16/16] 0.0, 128
      %v565 = vpop.trf.xlu0
      %v566 = vpop.trf.xlu0
      %v567 = vpop.trf.xlu0
      %v568 = vpop.trf.xlu0
      %v569 = vpop.trf.xlu0
      %v570 = vpop.trf.xlu0
      %v571 = vpop.trf.xlu0
      %v572 = vpop.trf.xlu0
      %v573 = vpop.trf.xlu0
      %v574 = vpop.trf.xlu0
      %v575 = vpop.trf.xlu0
      %v576 = vpop.trf.xlu0
      %v577 = vpop.trf.xlu0
      %v578 = vpop.trf.xlu0
      %v579 = vpop.trf.xlu0
      %v580 = vpop.trf.xlu0
      %v582 = vsel %vm276, %v565, 0
      %v585 = vsel %vm276, %v566, 0
      %v588 = vsel %vm276, %v567, 0
      %v591 = vsel %vm276, %v568, 0
      %593 = vmatprep.subr.mxu0 0.0
      %594 = vmatpush1.msra.mxu0 %v548
      %595 = vmatprep.subr.mxu0 0.0
      %596 = vmatpush1.msra.mxu0 0.0
      %597 = vmatprep.subr.mxu0 0.0
      %598 = vmatpush1.msra.mxu0 0.0
      %599 = vmatprep.subr.mxu0 0.0
      %600 = vmatpush1.msra.mxu0 0.0
      %601 = vmatprep.subr.mxu0 0.0
      %602 = vmatpush1.msra.mxu0 0.0
      %603 = vmatprep.subr.mxu0 0.0
      %604 = vmatpush1.msra.mxu0 0.0
      %605 = vmatprep.subr.mxu0 0.0
      %606 = vmatpush1.msra.mxu0 0.0
      %607 = vmatprep.subr.mxu0 0.0
      %608 = vmatpush1.msra.mxu0 0.0
      %609 = vmatprep.subr.mxu0 0.0
      %610 = vmatpush1.msra.mxu0 0.0
      %611 = vmatprep.subr.mxu0 0.0
      %612 = vmatpush1.msra.mxu0 0.0
      %613 = vmatprep.subr.mxu0 0.0
      %614 = vmatpush1.msra.mxu0 0.0
      %615 = vmatprep.subr.mxu0 0.0
      %616 = vmatpush1.msra.mxu0 0.0
      %617 = vmatprep.subr.mxu0 0.0
      %618 = vmatpush1.msra.mxu0 0.0
      %619 = vmatprep.subr.mxu0 0.0
      %620 = vmatpush1.msra.mxu0 0.0
      %621 = vmatprep.subr.mxu0 0.0
      %622 = vmatpush1.msra.mxu0 0.0
      %623 = vmatprep.subr.mxu0 0.0
      %624 = vmatpush1.msra.mxu0 0.0
      %625 = vmatprep.subr.mxu0 0.0
      %626 = vmatpush1.msra.mxu0 0.0
      %627 = vmatprep.subr.mxu0 0.0
      %628 = vmatpush1.msra.mxu0 0.0
      %629 = vmatprep.subr.mxu0 0.0
      %630 = vmatpush1.msra.mxu0 0.0
      %631 = vmatprep.subr.mxu0 0.0
      %632 = vmatpush1.msra.mxu0 0.0
      %633 = vmatprep.subr.mxu0 0.0
      %634 = vmatpush1.msra.mxu0 0.0
      %635 = vmatprep.subr.mxu0 0.0
      %636 = vmatpush1.msra.mxu0 0.0
      %637 = vmatprep.subr.mxu0 0.0
      %638 = vmatpush1.msra.mxu0 0.0
      %639 = vmatprep.subr.mxu0 0.0
      %640 = vmatpush1.msra.mxu0 0.0
      %641 = vmatprep.subr.mxu0 0.0
      %642 = vmatpush1.msra.mxu0 0.0
      %643 = vmatprep.subr.mxu0 0.0
      %644 = vmatpush1.msra.mxu0 0.0
      %645 = vmatprep.subr.mxu0 0.0
      %646 = vmatpush1.msra.mxu0 0.0
      %647 = vmatprep.subr.mxu0 0.0
      %648 = vmatpush1.msra.mxu0 0.0
      %649 = vmatprep.subr.mxu0 0.0
      %650 = vmatpush1.msra.mxu0 0.0
      %651 = vmatprep.subr.mxu0 0.0
      %652 = vmatpush1.msra.mxu0 0.0
      %653 = vmatprep.subr.mxu0 0.0
      %654 = vmatpush1.msra.mxu0 0.0
      %655 = vmatprep.subr.mxu0 0.0
      %656 = vmatpush1.msra.mxu0 0.0
      %657 = vmatprep.mubr.f32.mxu0 0.0
      %658 = vmatmul.mubr.f32.gmra.mrb[0].mxu0 %v582
      %v659 = vpop.f32.mrb[0].mxu0
      %v660 = vadd.f32 0.0, %v659
      %v661 = vpop.f32.mrb[0].mxu0
      %662 = vmatprep.mubr.f32.mxu0 0.0
      %663 = vmatmul.mubr.f32.gmra.mrb[0].mxu0 %v585
      %v664 = vpop.f32.mrb[0].mxu0
      %v665 = vadd.f32 0.0, %v664
      %v666 = vpop.f32.mrb[0].mxu0
      %667 = vmatprep.mubr.f32.mxu0 0.0
      %668 = vmatmul.mubr.f32.gmra.mrb[0].mxu0 %v588
      %v669 = vpop.f32.mrb[0].mxu0
      %v670 = vadd.f32 0.0, %v669
      %v671 = vpop.f32.mrb[0].mxu0
      %672 = vmatprep.mubr.f32.mxu0 0.0
      %673 = vmatmul.mubr.f32.gmra.mrb[0].mxu0 %v591
      %v674 = vpop.f32.mrb[0].mxu0
      %v675 = vadd.f32 0.0, %v674
      %v676 = vpop.f32.mrb[0].mxu0
      %677 = vdwg.mxu0
      %v678 = vmul.f32 %v660, 0.125
      %v679 = vmul.f32 %v665, 0.125
      %v680 = vmul.f32 %v670, 0.125
      %v681 = vmul.f32 %v675, 0.125
      %v682 = vadd.f32 %v537, %v678
      %v683 = vadd.f32 %v538, %v679
      %v684 = vadd.f32 %v539, %v680
      %v685 = vadd.f32 %v540, %v681
      %v686 = vmul.f32 %v682, %v682
      %v687 = vmul.f32 %v683, %v683
      %v688 = vmul.f32 %v684, %v684
      %v689 = vmul.f32 %v685, %v685
      %v690 = vsel %vm70, %v686, 0.0
      %691 = vadd.xlane.f32.xlu0 %v690
      %v692 = vpop.xlane.xlu0 %691
      %v693 = vsel %vm70, %v687, 0.0
      %694 = vadd.xlane.f32.xlu0 %v693
      %v695 = vpop.xlane.xlu0 %694
      %v696 = vsel %vm70, %v688, 0.0
      %697 = vadd.xlane.f32.xlu0 %v696
      %v698 = vpop.xlane.xlu0 %697
      %v699 = vsel %vm70, %v689, 0.0
      %700 = vadd.xlane.f32.xlu0 %v699
      %v701 = vpop.xlane.xlu0 %700
      %v702 = vadd.f32 %v692, %v695
      %v703 = vadd.f32 %v702, %v698
      %v704 = vadd.f32 %v703, %v701
      %v705 = vrot.slane %v704, 4
      %v706 = vadd.f32 %v704, %v705
      %v707 = vrot.slane %v706, 2
      %v708 = vadd.f32 %v706, %v707
      %v709 = vrot.slane %v708, 1
      %v710 = vadd.f32 %v708, %v709
      %v711 = vrcp.pop 4096.0
      %v712 = vmul.f32 %v710, %v711
      %s713 = vtos %v712
      %s714 = scalar_lea.smem [#allocation10], 0
      %715 = sst [smem:[%s714]] %s713
    $region25: #{tpu_custom_call.1} parent=1 // pred_fallthru
      _
    // Predicated region
    $region26: #{tpu_custom_call.1} parent=1 // pred_check
      _
    $region27: #{tpu_custom_call.1} parent=1 // pred_check_branch
      %717 = sbr.rel (0) target = $region29
    $region28: #{tpu_custom_call.1} parent=1 // pred_region
      %s719 = ssub.s32 16, 16
      %720 = vsyncadd [#allocation7], %s719
      %723 = dma.smem_to_hbm [#allocation10], 16, %s2, [#allocation7]
    $region29: #{tpu_custom_call.1} parent=1 // pred_fallthru
      _
    // Predicated region
    $region30: #{tpu_custom_call.1} parent=1 // pred_check
      _
    $region31: #{tpu_custom_call.1} parent=1 // pred_check_branch
      %725 = sbr.rel (0) target = $region33
    $region32: #{tpu_custom_call.1} parent=1 // pred_region
      %726 = dma.done [#allocation7], 16
    $region33: #{tpu_custom_call.1} parent=1 // pred_fallthru
      _
    %727 = sfence
    %728 = vsyncpa [#allocation6], 1
    %729 = vsyncpa [#allocation9], 1
    %730 = vsyncpa [#allocation7], 1

</llo_original>
